<compile_context>
chip_gen: v6e
topology: v6e:2x2x1
jax: 0.10.0
libtpu: 0.0.40
codegen_flags: <defaults>
</compile_context>

<pallas_src>
import jax
import jax.numpy as jnp
from jax.experimental import pallas as pl
from jax.experimental.pallas import tpu as pltpu


def _bahdanau_kernel(ctx_ref, h_ref, x_ref,
                     we_ref, be_ref, wd_ref, bd_ref, wv_ref, bv_ref,
                     wrc_ref, wrh_ref, wrx_ref, br_ref,
                     out_ref, *attn_out_ref):
    ctx = ctx_ref[...]                       # (Bb, T, H)
    hh = h_ref[...]                          # (Bb, H)
    xx = x_ref[...]                          # (Bb, E)
    Bb, T, H = ctx.shape
    f32 = jnp.float32

    # gamma_encoder: fold (Bb, T) into the matmul M dimension (T=multiple of 8
    # keeps the merge layout-free).
    ge = jnp.dot(ctx.reshape(Bb * T, H), we_ref[...],
                 preferred_element_type=f32) + be_ref[...].astype(f32)
    # gamma_decoder
    gd = jnp.dot(hh, wd_ref[...],
                 preferred_element_type=f32) + bd_ref[...].astype(f32)

    s = jnp.tanh(ge.reshape(Bb, T, H) + gd.reshape(Bb, 1, H))          # (Bb, T, H)

    # linear_v as a lane reduction (an N=1 MXU matmul would be ~empty); keeping
    # T on the sublane axis avoids any relayout on the softmax path.
    z = jnp.sum(s * wv_ref[...].astype(f32), axis=-1, keepdims=True)   # (Bb, T, 1)
    z = z + bv_ref[...].astype(f32)                                    # linear_v bias

    # softmax over T (axis=1)
    m = jnp.max(z, axis=1, keepdims=True)                              # (Bb, 1, 1)
    e = jnp.exp(z - m)
    denom = jnp.sum(e, axis=1, keepdims=True)
    # exact reciprocal keeps 1e-5 parity with the reference; approx=True is a
    # free EUP win when bit-level parity is not required.
    attn = e * pl.reciprocal(denom, approx=False)                      # (Bb, T, 1)

    if attn_out_ref:                         # optional weights output (skippable)
        attn_out_ref[0][...] = attn.astype(attn_out_ref[0].dtype)

    # c_t = weights @ context  -> broadcast-multiply + sublane reduction
    c_t = jnp.sum(attn * ctx.astype(f32), axis=1, keepdims=True)       # (Bb, 1, H)
    c_t = c_t.reshape(Bb, H)

    # linear_r with host-side de-interleaved (parity) columns, then maxout.
    def lin_r(p):
        r = jnp.dot(c_t.astype(wrc_ref.dtype), wrc_ref[p],
                    preferred_element_type=f32)
        r = r + jnp.dot(hh, wrh_ref[p], preferred_element_type=f32)
        r = r + jnp.dot(xx, wrx_ref[p], preferred_element_type=f32)
        return r + br_ref[p].astype(f32)

    out_ref[...] = jnp.maximum(lin_r(0), lin_r(1)).astype(out_ref.dtype)


def bahdanau_attention_forward(h, x, context,
                               w_enc, b_enc, w_dec, b_dec, w_v, b_v, w_r, b_r,
                               *, return_weights=True, batch_tile=None):
    """h: (B, H), x: (B, E), context: (B, T, H) (batch-major, i.e. after
    init_context's transpose).  Weights use PyTorch nn.Linear (out, in) layout."""
    B, T, H = context.shape
    E = x.shape[-1]
    assert h.shape == (B, H) and x.shape == (B, E)
    assert w_enc.shape == (H, H) and w_dec.shape == (H, H)
    assert w_v.shape == (1, H) and b_v.shape == (1,)
    assert w_r.shape == (2 * H, 2 * H + E) and b_r.shape == (2 * H,)

    # ---- one-time host-side weight plumbing (keeps the kernel layout-clean) ----
    we_t = w_enc.T                           # (H, H): ge = ctx @ we_t + b
    wd_t = w_dec.T                           # (H, H)
    be = b_enc.reshape(1, H)
    bd = b_dec.reshape(1, H)
    wv = w_v.reshape(1, H)
    bv = b_v.reshape(1, 1)

    # linear_r: r = [c_t, h, x] @ w_r.T + b_r, then maxout over adjacent column
    # pairs.  De-interleave columns into parity planes and split rows per input.
    wr_t = w_r.T                             # (2H + E, 2H)
    wr_eo = jnp.stack([wr_t[:, 0::2], wr_t[:, 1::2]], axis=0)   # (2, 2H+E, H)
    wr_c = wr_eo[:, :H, :]                   # (2, H, H)   rows for c_t
    wr_h = wr_eo[:, H:2 * H, :]              # (2, H, H)   rows for h
    wr_x = wr_eo[:, 2 * H:, :]               # (2, E, H)   rows for x
    br = jnp.stack([b_r[0::2], b_r[1::2]], axis=0).reshape(2, 1, H)

    # ---- batch tiling: whole batch per step when small, else aligned tiles ----
    if batch_tile is None:
        batch_tile = B if (B <= 256 or B % 128 != 0) else 128
    Bb = batch_tile
    assert B % Bb == 0, "batch_tile must divide the batch"
    assert Bb == B or Bb % 8 == 0, "partial batch tiles must be sublane-aligned"
    grid = (B // Bb,)

    def const_spec(shape):
        if len(shape) == 2:
            return pl.BlockSpec(shape, lambda i: (0, 0))
        return pl.BlockSpec(shape, lambda i: (0, 0, 0))

    in_specs = [
        pl.BlockSpec((Bb, T, H), lambda i: (i, 0, 0)),   # context
        pl.BlockSpec((Bb, H), lambda i: (i, 0)),         # h
        pl.BlockSpec((Bb, E), lambda i: (i, 0)),         # x
        const_spec((H, H)), const_spec((1, H)),          # encoder W^T, b
        const_spec((H, H)), const_spec((1, H)),          # decoder W^T, b
        const_spec((1, H)), const_spec((1, 1)),          # v weight row, bias
        const_spec((2, H, H)), const_spec((2, H, H)),    # linear_r (c_t, h) planes
        const_spec((2, E, H)), const_spec((2, 1, H)),    # linear_r x plane, bias
    ]

    if return_weights:
        # weights kept as (B, T, 1) inside the kernel (T on sublanes, no
        # relayout); squeezed to (B, T) outside.  float32 like the reference.
        out_shape = (jax.ShapeDtypeStruct((B, H), h.dtype),
                     jax.ShapeDtypeStruct((B, T, 1), jnp.float32))
        out_specs = (pl.BlockSpec((Bb, H), lambda i: (i, 0)),
                     pl.BlockSpec((Bb, T, 1), lambda i: (i, 0, 0)))
    else:
        out_shape = jax.ShapeDtypeStruct((B, H), h.dtype)
        out_specs = pl.BlockSpec((Bb, H), lambda i: (i, 0))

    flops = (2 * B * T * H * H                 # linear_encoder
             + 2 * B * H * H                   # linear_decoder
             + 3 * B * T * H                   # v-dot + softmax elementwise
             + 2 * B * T * H                   # c_t
             + 2 * B * (2 * H + E) * 2 * H)    # linear_r (both parities)
    cost = pl.CostEstimate(
        flops=flops,
        transcendentals=B * T * H + B * T,     # tanh + exp
        bytes_accessed=4 * (context.size + h.size + x.size + w_enc.size
                            + w_dec.size + w_v.size + w_r.size + b_r.size
                            + 4 * H + 1 + B * H + B * T))

    outs = pl.pallas_call(
        _bahdanau_kernel,
        grid=grid,
        in_specs=in_specs,
        out_specs=out_specs,
        out_shape=out_shape,
        compiler_params=pltpu.CompilerParams(
            dimension_semantics=("parallel",),
            vmem_limit_bytes=32 * 1024 * 1024),
        cost_estimate=cost,
    )(context, h, x, we_t, be, wd_t, bd, wv, bv, wr_c, wr_h, wr_x, br)

    if return_weights:
        output, weights3 = outs
        return output, weights3.reshape(B, T)
    return outs


def bahdanau_attention_reference(h, x, context,
                                 w_enc, b_enc, w_dec, b_dec, w_v, b_v, w_r, b_r):
    """Plain-JAX reference mirroring the PyTorch forward."""
    H = h.shape[-1]
    hp = jax.lax.Precision.HIGHEST
    ge = jnp.einsum("bth,kh->btk", context, w_enc, precision=hp) + b_enc
    gd = (jnp.einsum("bh,kh->bk", h, w_dec, precision=hp) + b_dec)[:, None, :]
    scores = jnp.einsum("bth,kh->btk", jnp.tanh(ge + gd), w_v,
                        precision=hp)[..., 0] + b_v
    weights = jax.nn.softmax(scores, axis=1)
    c_t = jnp.einsum("bt,bth->bh", weights, context, precision=hp)
    combined = jnp.concatenate([c_t, h, x], axis=1)
    r_t = jnp.einsum("bf,kf->bk", combined, w_r, precision=hp) + b_r
    out = jnp.max(r_t.reshape(-1, H, 2), axis=2)
    return out, weights


if __name__ == "__main__":
    B, T, H, E = 2, 8, 32, 16            # batch, seq, hidden_size, emb_size

    key = jax.random.PRNGKey(0)
    ks = jax.random.split(key, 11)

    context = jax.random.normal(ks[0], (B, T, H), jnp.float32)
    h = jax.random.normal(ks[1], (B, H), jnp.float32)
    x = jax.random.normal(ks[2], (B, E), jnp.float32)

    def linear_init(kw, kb, out_f, in_f):   # PyTorch-style uniform init
        bound = 1.0 / (in_f ** 0.5)
        w = jax.random.uniform(kw, (out_f, in_f), jnp.float32, -bound, bound)
        b = jax.random.uniform(kb, (out_f,), jnp.float32, -bound, bound)
        return w, b

    w_enc, b_enc = linear_init(ks[3], ks[4], H, H)
    w_dec, b_dec = linear_init(ks[5], ks[6], H, H)
    w_v, b_v = linear_init(ks[7], ks[8], 1, H)
    w_r, b_r = linear_init(ks[9], ks[10], 2 * H, 2 * H + E)

    out, weights = bahdanau_attention_forward(
        h, x, context, w_enc, b_enc, w_dec, b_dec, w_v, b_v, w_r, b_r)
    jax.block_until_ready((out, weights))

    out_ref, weights_ref = bahdanau_attention_reference(
        h, x, context, w_enc, b_enc, w_dec, b_dec, w_v, b_v, w_r, b_r)

    assert out.shape == (B, H) and weights.shape == (B, T)
    assert jnp.allclose(out, out_ref, atol=1e-5, rtol=1e-5), "output mismatch"
    assert jnp.allclose(weights, weights_ref, atol=1e-5, rtol=1e-5), "weights mismatch"

    print("KERNEL_OK")
</pallas_src>

<mosaic_0001>
module attributes {stable_mosaic.version = 11 : i64} {
  func.func @_bahdanau_kernel(%arg0: i32, %arg1: memref<2x8x32xf32, #tpu.memory_space<vmem>>, %arg2: memref<2x32xf32, #tpu.memory_space<vmem>>, %arg3: memref<2x16xf32, #tpu.memory_space<vmem>>, %arg4: memref<32x32xf32, #tpu.memory_space<vmem>>, %arg5: memref<1x32xf32, #tpu.memory_space<vmem>>, %arg6: memref<32x32xf32, #tpu.memory_space<vmem>>, %arg7: memref<1x32xf32, #tpu.memory_space<vmem>>, %arg8: memref<1x32xf32, #tpu.memory_space<vmem>>, %arg9: memref<1x1xf32, #tpu.memory_space<vmem>>, %arg10: memref<2x32x32xf32, #tpu.memory_space<vmem>>, %arg11: memref<2x32x32xf32, #tpu.memory_space<vmem>>, %arg12: memref<2x16x32xf32, #tpu.memory_space<vmem>>, %arg13: memref<2x1x32xf32, #tpu.memory_space<vmem>>, %arg14: memref<2x32xf32, #tpu.memory_space<vmem>>, %arg15: memref<2x8x1xf32, #tpu.memory_space<vmem>>) attributes {dimension_semantics = [#tpu.dimension_semantics<parallel>], iteration_bounds = array<i64: 1>, scalar_prefetch = 0 : i64, scratch_operands = 0 : i64, tpu.core_type = #tpu.core_type<tc>, window_params = [{transform_indices = @transform_0, window_bounds = array<i64: 2, 8, 32>}, {transform_indices = @transform_1, window_bounds = array<i64: 2, 32>}, {transform_indices = @transform_2, window_bounds = array<i64: 2, 16>}, {pipeline_mode = #tpu.pipeline_mode<synchronous>, transform_indices = @transform_3, window_bounds = array<i64: 32, 32>}, {pipeline_mode = #tpu.pipeline_mode<synchronous>, transform_indices = @transform_4, window_bounds = array<i64: 1, 32>}, {pipeline_mode = #tpu.pipeline_mode<synchronous>, transform_indices = @transform_5, window_bounds = array<i64: 32, 32>}, {pipeline_mode = #tpu.pipeline_mode<synchronous>, transform_indices = @transform_6, window_bounds = array<i64: 1, 32>}, {pipeline_mode = #tpu.pipeline_mode<synchronous>, transform_indices = @transform_7, window_bounds = array<i64: 1, 32>}, {pipeline_mode = #tpu.pipeline_mode<synchronous>, transform_indices = @transform_8, window_bounds = array<i64: 1, 1>}, {pipeline_mode = #tpu.pipeline_mode<synchronous>, transform_indices = @transform_9, window_bounds = array<i64: 2, 32, 32>}, {pipeline_mode = #tpu.pipeline_mode<synchronous>, transform_indices = @transform_10, window_bounds = array<i64: 2, 32, 32>}, {pipeline_mode = #tpu.pipeline_mode<synchronous>, transform_indices = @transform_11, window_bounds = array<i64: 2, 16, 32>}, {pipeline_mode = #tpu.pipeline_mode<synchronous>, transform_indices = @transform_12, window_bounds = array<i64: 2, 1, 32>}, {transform_indices = @transform_13, window_bounds = array<i64: 2, 32>}, {transform_indices = @transform_14, window_bounds = array<i64: 2, 8, 1>}]} {
    %c0 = arith.constant 0 : index
    %c0_0 = arith.constant 0 : index
    %c0_1 = arith.constant 0 : index
    %0 = vector.load %arg1[%c0, %c0_0, %c0_1] : memref<2x8x32xf32, #tpu.memory_space<vmem>>, vector<2x8x32xf32>
    %c0_2 = arith.constant 0 : index
    %c0_3 = arith.constant 0 : index
    %1 = vector.load %arg2[%c0_2, %c0_3] : memref<2x32xf32, #tpu.memory_space<vmem>>, vector<2x32xf32>
    %c0_4 = arith.constant 0 : index
    %c0_5 = arith.constant 0 : index
    %2 = vector.load %arg3[%c0_4, %c0_5] : memref<2x16xf32, #tpu.memory_space<vmem>>, vector<2x16xf32>
    %3 = vector.shape_cast %0 : vector<2x8x32xf32> to vector<16x32xf32>
    %c0_6 = arith.constant 0 : index
    %c0_7 = arith.constant 0 : index
    %4 = vector.load %arg4[%c0_6, %c0_7] : memref<32x32xf32, #tpu.memory_space<vmem>>, vector<32x32xf32>
    %cst = arith.constant dense<0.000000e+00> : vector<16x32xf32>
    %5 = tpu.matmul %3, %4, %cst {dimension_numbers = #tpu.dot_dimension_numbers<[1], [0], [0], [1], [0, 0, 1, 1], [], []>} : vector<16x32xf32>, vector<32x32xf32>, vector<16x32xf32> -> vector<16x32xf32>
    %c0_8 = arith.constant 0 : index
    %c0_9 = arith.constant 0 : index
    %6 = vector.load %arg5[%c0_8, %c0_9] : memref<1x32xf32, #tpu.memory_space<vmem>>, vector<1x32xf32>
    %7 = vector.broadcast %6 : vector<1x32xf32> to vector<16x32xf32>
    %8 = arith.addf %5, %7 : vector<16x32xf32>
    %c0_10 = arith.constant 0 : index
    %c0_11 = arith.constant 0 : index
    %9 = vector.load %arg6[%c0_10, %c0_11] : memref<32x32xf32, #tpu.memory_space<vmem>>, vector<32x32xf32>
    %cst_12 = arith.constant dense<0.000000e+00> : vector<2x32xf32>
    %10 = tpu.matmul %1, %9, %cst_12 {dimension_numbers = #tpu.dot_dimension_numbers<[1], [0], [0], [1], [0, 0, 1, 1], [], []>} : vector<2x32xf32>, vector<32x32xf32>, vector<2x32xf32> -> vector<2x32xf32>
    %c0_13 = arith.constant 0 : index
    %c0_14 = arith.constant 0 : index
    %11 = vector.load %arg7[%c0_13, %c0_14] : memref<1x32xf32, #tpu.memory_space<vmem>>, vector<1x32xf32>
    %12 = vector.broadcast %11 : vector<1x32xf32> to vector<2x32xf32>
    %13 = arith.addf %10, %12 : vector<2x32xf32>
    %14 = vector.shape_cast %8 : vector<16x32xf32> to vector<2x8x32xf32>
    %15 = vector.shape_cast %13 : vector<2x32xf32> to vector<2x1x32xf32>
    %16 = vector.broadcast %15 : vector<2x1x32xf32> to vector<2x8x32xf32>
    %17 = arith.addf %14, %16 : vector<2x8x32xf32>
    %18 = math.tanh %17 : vector<2x8x32xf32>
    %c0_15 = arith.constant 0 : index
    %c0_16 = arith.constant 0 : index
    %19 = vector.load %arg8[%c0_15, %c0_16] : memref<1x32xf32, #tpu.memory_space<vmem>>, vector<1x32xf32>
    %20 = vector.shape_cast %19 : vector<1x32xf32> to vector<1x1x32xf32>
    %21 = vector.broadcast %20 : vector<1x1x32xf32> to vector<2x8x32xf32>
    %22 = arith.mulf %18, %21 : vector<2x8x32xf32>
    %cst_17 = arith.constant dense<0.000000e+00> : vector<2x8xf32>
    %23 = vector.multi_reduction <add>, %22, %cst_17 [2] : vector<2x8x32xf32> to vector<2x8xf32>
    %24 = vector.shape_cast %23 : vector<2x8xf32> to vector<2x8x1xf32>
    %c0_18 = arith.constant 0 : index
    %c0_19 = arith.constant 0 : index
    %25 = vector.load %arg9[%c0_18, %c0_19] : memref<1x1xf32, #tpu.memory_space<vmem>>, vector<1x1xf32>
    %26 = vector.shape_cast %25 : vector<1x1xf32> to vector<1x1x1xf32>
    %27 = vector.broadcast %26 : vector<1x1x1xf32> to vector<2x8x1xf32>
    %28 = arith.addf %24, %27 : vector<2x8x1xf32>
    %cst_20 = arith.constant dense<0xFF800000> : vector<2x1xf32>
    %29 = vector.multi_reduction <maximumf>, %28, %cst_20 [1] : vector<2x8x1xf32> to vector<2x1xf32>
    %30 = vector.shape_cast %29 : vector<2x1xf32> to vector<2x1x1xf32>
    %31 = vector.broadcast %30 : vector<2x1x1xf32> to vector<2x8x1xf32>
    %32 = arith.subf %28, %31 : vector<2x8x1xf32>
    %33 = math.exp %32 : vector<2x8x1xf32>
    %cst_21 = arith.constant dense<0.000000e+00> : vector<2x1xf32>
    %34 = vector.multi_reduction <add>, %33, %cst_21 [1] : vector<2x8x1xf32> to vector<2x1xf32>
    %35 = vector.shape_cast %34 : vector<2x1xf32> to vector<2x1x1xf32>
    %36 = tpu.reciprocal %35 : vector<2x1x1xf32> -> vector<2x1x1xf32>
    %37 = vector.broadcast %36 : vector<2x1x1xf32> to vector<2x8x1xf32>
    %38 = arith.mulf %33, %37 : vector<2x8x1xf32>
    %c0_22 = arith.constant 0 : index
    %c0_23 = arith.constant 0 : index
    %c0_24 = arith.constant 0 : index
    %39 = vector.load %arg15[%c0_22, %c0_23, %c0_24] : memref<2x8x1xf32, #tpu.memory_space<vmem>>, vector<2x8x1xf32>
    tpu.vector_store %arg15[%c0_22, %c0_23, %c0_24], %38 {strides = array<i32>} : memref<2x8x1xf32, #tpu.memory_space<vmem>>, vector<2x8x1xf32>,
    %40 = vector.broadcast %38 : vector<2x8x1xf32> to vector<2x8x32xf32>
    %41 = arith.mulf %40, %0 : vector<2x8x32xf32>
    %cst_25 = arith.constant dense<0.000000e+00> : vector<2x32xf32>
    %42 = vector.multi_reduction <add>, %41, %cst_25 [1] : vector<2x8x32xf32> to vector<2x32xf32>
    %43 = vector.shape_cast %42 : vector<2x32xf32> to vector<2x1x32xf32>
    %44 = vector.shape_cast %43 : vector<2x1x32xf32> to vector<2x32xf32>
    %c0_26 = arith.constant 0 : index
    %c0_27 = arith.constant 0 : index
    %c0_28 = arith.constant 0 : index
    %45 = vector.load %arg10[%c0_26, %c0_27, %c0_28] : memref<2x32x32xf32, #tpu.memory_space<vmem>>, vector<1x32x32xf32>
    %46 = vector.shape_cast %45 : vector<1x32x32xf32> to vector<32x32xf32>
    %cst_29 = arith.constant dense<0.000000e+00> : vector<2x32xf32>
    %47 = tpu.matmul %44, %46, %cst_29 {dimension_numbers = #tpu.dot_dimension_numbers<[1], [0], [0], [1], [0, 0, 1, 1], [], []>} : vector<2x32xf32>, vector<32x32xf32>, vector<2x32xf32> -> vector<2x32xf32>
    %c0_30 = arith.constant 0 : index
    %c0_31 = arith.constant 0 : index
    %c0_32 = arith.constant 0 : index
    %48 = vector.load %arg11[%c0_30, %c0_31, %c0_32] : memref<2x32x32xf32, #tpu.memory_space<vmem>>, vector<1x32x32xf32>
    %49 = vector.shape_cast %48 : vector<1x32x32xf32> to vector<32x32xf32>
    %cst_33 = arith.constant dense<0.000000e+00> : vector<2x32xf32>
    %50 = tpu.matmul %1, %49, %cst_33 {dimension_numbers = #tpu.dot_dimension_numbers<[1], [0], [0], [1], [0, 0, 1, 1], [], []>} : vector<2x32xf32>, vector<32x32xf32>, vector<2x32xf32> -> vector<2x32xf32>
    %51 = arith.addf %47, %50 : vector<2x32xf32>
    %c0_34 = arith.constant 0 : index
    %c0_35 = arith.constant 0 : index
    %c0_36 = arith.constant 0 : index
    %52 = vector.load %arg12[%c0_34, %c0_35, %c0_36] : memref<2x16x32xf32, #tpu.memory_space<vmem>>, vector<1x16x32xf32>
    %53 = vector.shape_cast %52 : vector<1x16x32xf32> to vector<16x32xf32>
    %cst_37 = arith.constant dense<0.000000e+00> : vector<2x32xf32>
    %54 = tpu.matmul %2, %53, %cst_37 {dimension_numbers = #tpu.dot_dimension_numbers<[1], [0], [0], [1], [0, 0, 1, 1], [], []>} : vector<2x16xf32>, vector<16x32xf32>, vector<2x32xf32> -> vector<2x32xf32>
    %55 = arith.addf %51, %54 : vector<2x32xf32>
    %c0_38 = arith.constant 0 : index
    %c0_39 = arith.constant 0 : index
    %c0_40 = arith.constant 0 : index
    %56 = vector.load %arg13[%c0_38, %c0_39, %c0_40] : memref<2x1x32xf32, #tpu.memory_space<vmem>>, vector<1x1x32xf32>
    %57 = vector.shape_cast %56 : vector<1x1x32xf32> to vector<1x32xf32>
    %58 = vector.broadcast %57 : vector<1x32xf32> to vector<2x32xf32>
    %59 = arith.addf %55, %58 : vector<2x32xf32>
    %c1 = arith.constant 1 : index
    %c0_41 = arith.constant 0 : index
    %c0_42 = arith.constant 0 : index
    %60 = vector.load %arg10[%c1, %c0_41, %c0_42] : memref<2x32x32xf32, #tpu.memory_space<vmem>>, vector<1x32x32xf32>
    %61 = vector.shape_cast %60 : vector<1x32x32xf32> to vector<32x32xf32>
    %cst_43 = arith.constant dense<0.000000e+00> : vector<2x32xf32>
    %62 = tpu.matmul %44, %61, %cst_43 {dimension_numbers = #tpu.dot_dimension_numbers<[1], [0], [0], [1], [0, 0, 1, 1], [], []>} : vector<2x32xf32>, vector<32x32xf32>, vector<2x32xf32> -> vector<2x32xf32>
    %c1_44 = arith.constant 1 : index
    %c0_45 = arith.constant 0 : index
    %c0_46 = arith.constant 0 : index
    %63 = vector.load %arg11[%c1_44, %c0_45, %c0_46] : memref<2x32x32xf32, #tpu.memory_space<vmem>>, vector<1x32x32xf32>
    %64 = vector.shape_cast %63 : vector<1x32x32xf32> to vector<32x32xf32>
    %cst_47 = arith.constant dense<0.000000e+00> : vector<2x32xf32>
    %65 = tpu.matmul %1, %64, %cst_47 {dimension_numbers = #tpu.dot_dimension_numbers<[1], [0], [0], [1], [0, 0, 1, 1], [], []>} : vector<2x32xf32>, vector<32x32xf32>, vector<2x32xf32> -> vector<2x32xf32>
    %66 = arith.addf %62, %65 : vector<2x32xf32>
    %c1_48 = arith.constant 1 : index
    %c0_49 = arith.constant 0 : index
    %c0_50 = arith.constant 0 : index
    %67 = vector.load %arg12[%c1_48, %c0_49, %c0_50] : memref<2x16x32xf32, #tpu.memory_space<vmem>>, vector<1x16x32xf32>
    %68 = vector.shape_cast %67 : vector<1x16x32xf32> to vector<16x32xf32>
    %cst_51 = arith.constant dense<0.000000e+00> : vector<2x32xf32>
    %69 = tpu.matmul %2, %68, %cst_51 {dimension_numbers = #tpu.dot_dimension_numbers<[1], [0], [0], [1], [0, 0, 1, 1], [], []>} : vector<2x16xf32>, vector<16x32xf32>, vector<2x32xf32> -> vector<2x32xf32>
    %70 = arith.addf %66, %69 : vector<2x32xf32>
    %c1_52 = arith.constant 1 : index
    %c0_53 = arith.constant 0 : index
    %c0_54 = arith.constant 0 : index
    %71 = vector.load %arg13[%c1_52, %c0_53, %c0_54] : memref<2x1x32xf32, #tpu.memory_space<vmem>>, vector<1x1x32xf32>
    %72 = vector.shape_cast %71 : vector<1x1x32xf32> to vector<1x32xf32>
    %73 = vector.broadcast %72 : vector<1x32xf32> to vector<2x32xf32>
    %74 = arith.addf %70, %73 : vector<2x32xf32>
    %75 = arith.maximumf %59, %74 : vector<2x32xf32>
    %c0_55 = arith.constant 0 : index
    %c0_56 = arith.constant 0 : index
    %76 = vector.load %arg14[%c0_55, %c0_56] : memref<2x32xf32, #tpu.memory_space<vmem>>, vector<2x32xf32>
    tpu.vector_store %arg14[%c0_55, %c0_56], %75 {strides = array<i32>} : memref<2x32xf32, #tpu.memory_space<vmem>>, vector<2x32xf32>,
    return
  }
  func.func @transform_0(%arg0: i32) -> (i32, i32, i32) {
    %c0_i32 = arith.constant 0 : i32
    %c0_i32_0 = arith.constant 0 : i32
    %c0_i32_1 = arith.constant 0 : i32
    return %arg0, %c0_i32, %c0_i32_0 : i32, i32, i32
  }
  func.func @transform_1(%arg0: i32) -> (i32, i32) {
    %c0_i32 = arith.constant 0 : i32
    %c0_i32_0 = arith.constant 0 : i32
    return %arg0, %c0_i32 : i32, i32
  }
  func.func @transform_2(%arg0: i32) -> (i32, i32) {
    %c0_i32 = arith.constant 0 : i32
    %c0_i32_0 = arith.constant 0 : i32
    return %arg0, %c0_i32 : i32, i32
  }
  func.func @transform_3(%arg0: i32) -> (i32, i32) {
    %c0_i32 = arith.constant 0 : i32
    %c0_i32_0 = arith.constant 0 : i32
    %c0_i32_1 = arith.constant 0 : i32
    return %c0_i32, %c0_i32_0 : i32, i32
  }
  func.func @transform_4(%arg0: i32) -> (i32, i32) {
    %c0_i32 = arith.constant 0 : i32
    %c0_i32_0 = arith.constant 0 : i32
    %c0_i32_1 = arith.constant 0 : i32
    return %c0_i32, %c0_i32_0 : i32, i32
  }
  func.func @transform_5(%arg0: i32) -> (i32, i32) {
    %c0_i32 = arith.constant 0 : i32
    %c0_i32_0 = arith.constant 0 : i32
    %c0_i32_1 = arith.constant 0 : i32
    return %c0_i32, %c0_i32_0 : i32, i32
  }
  func.func @transform_6(%arg0: i32) -> (i32, i32) {
    %c0_i32 = arith.constant 0 : i32
    %c0_i32_0 = arith.constant 0 : i32
    %c0_i32_1 = arith.constant 0 : i32
    return %c0_i32, %c0_i32_0 : i32, i32
  }
  func.func @transform_7(%arg0: i32) -> (i32, i32) {
    %c0_i32 = arith.constant 0 : i32
    %c0_i32_0 = arith.constant 0 : i32
    %c0_i32_1 = arith.constant 0 : i32
    return %c0_i32, %c0_i32_0 : i32, i32
  }
  func.func @transform_8(%arg0: i32) -> (i32, i32) {
    %c0_i32 = arith.constant 0 : i32
    %c0_i32_0 = arith.constant 0 : i32
    %c0_i32_1 = arith.constant 0 : i32
    return %c0_i32, %c0_i32_0 : i32, i32
  }
  func.func @transform_9(%arg0: i32) -> (i32, i32, i32) {
    %c0_i32 = arith.constant 0 : i32
    %c0_i32_0 = arith.constant 0 : i32
    %c0_i32_1 = arith.constant 0 : i32
    %c0_i32_2 = arith.constant 0 : i32
    return %c0_i32, %c0_i32_0, %c0_i32_1 : i32, i32, i32
  }
  func.func @transform_10(%arg0: i32) -> (i32, i32, i32) {
    %c0_i32 = arith.constant 0 : i32
    %c0_i32_0 = arith.constant 0 : i32
    %c0_i32_1 = arith.constant 0 : i32
    %c0_i32_2 = arith.constant 0 : i32
    return %c0_i32, %c0_i32_0, %c0_i32_1 : i32, i32, i32
  }
  func.func @transform_11(%arg0: i32) -> (i32, i32, i32) {
    %c0_i32 = arith.constant 0 : i32
    %c0_i32_0 = arith.constant 0 : i32
    %c0_i32_1 = arith.constant 0 : i32
    %c0_i32_2 = arith.constant 0 : i32
    return %c0_i32, %c0_i32_0, %c0_i32_1 : i32, i32, i32
  }
  func.func @transform_12(%arg0: i32) -> (i32, i32, i32) {
    %c0_i32 = arith.constant 0 : i32
    %c0_i32_0 = arith.constant 0 : i32
    %c0_i32_1 = arith.constant 0 : i32
    %c0_i32_2 = arith.constant 0 : i32
    return %c0_i32, %c0_i32_0, %c0_i32_1 : i32, i32, i32
  }
  func.func @transform_13(%arg0: i32) -> (i32, i32) {
    %c0_i32 = arith.constant 0 : i32
    %c0_i32_0 = arith.constant 0 : i32
    return %arg0, %c0_i32 : i32, i32
  }
  func.func @transform_14(%arg0: i32) -> (i32, i32, i32) {
    %c0_i32 = arith.constant 0 : i32
    %c0_i32_0 = arith.constant 0 : i32
    %c0_i32_1 = arith.constant 0 : i32
    return %arg0, %c0_i32, %c0_i32_0 : i32, i32, i32
  }
}

</mosaic_0001>

<llo_original>
// kernel: tpu_custom_call.1
$region0: #{tpu_custom_call.1}
  #allocation0 [shape = 'u32[]', space=smem, size = 0x4, offset = 0x4, fixed_abs, tag = 'smem constant byte address 0x4 - core index']
  #allocation1 [shape = 'u32[144,128]{1,0:T(1,128)}', space=vmem, size = 0x12000, scoped, tag = 'internal scratch']
  #allocation2 [shape = 'f32[1,1]{1,0:T(1,128)S(1)}', space=vmem, size = 0x200, scoped, tag = 'scoped memory for tpu_custom_call.1']
  %s0 = inlined_call_operand.hbm [shape: f32[2,8,32], index: 0, kind: input, shape index: {}]
  %s1 = inlined_call_operand.vmem [shape: f32[2,32], index: 1, kind: input, shape index: {}]
  %s2 = inlined_call_operand.vmem [shape: f32[2,16], index: 2, kind: input, shape index: {}]
  %s3 = inlined_call_operand.hbm [shape: f32[32,32], index: 3, kind: input, shape index: {}]
  %s4 = inlined_call_operand.vmem [shape: f32[1,32], index: 4, kind: input, shape index: {}]
  %s5 = inlined_call_operand.hbm [shape: f32[32,32], index: 5, kind: input, shape index: {}]
  %s6 = inlined_call_operand.vmem [shape: f32[1,32], index: 6, kind: input, shape index: {}]
  %s7 = inlined_call_operand.vmem [shape: f32[1,32], index: 7, kind: input, shape index: {}]
  %s8 = inlined_call_operand.<no memory space> [shape: f32[1,1], index: 8, kind: input, shape index: {}]
  %s9 = inlined_call_operand.hbm [shape: f32[2,32,32], index: 9, kind: input, shape index: {}]
  %s10 = inlined_call_operand.hbm [shape: f32[2,32,32], index: 10, kind: input, shape index: {}]
  %s11 = inlined_call_operand.hbm [shape: f32[2,16,32], index: 11, kind: input, shape index: {}]
  %s12 = inlined_call_operand.vmem [shape: f32[2,1,32], index: 12, kind: input, shape index: {}]
  %s13 = inlined_call_operand.hbm [shape: f32[2,32], index: 13, kind: output, shape index: {0}]
  %s14 = inlined_call_operand.vmem [shape: f32[2,8,1], index: 14, kind: output, shape index: {1}]
  %15 = xla_tuple %s13, %s14
  %s16 = sld [smem:[#allocation0]]
  $region94: #{tpu_custom_call.1} parent=0
    _
  %s18 = ssub.s32 1, %s16
  %s19 = scalar_select 0, %s18, %s16
  %v20 = vstv %s8
  %21 = vst [vmem:[#allocation2] sm:$0x1] %v20
  $region1: #{tpu_custom_call.1} parent=0
    #allocation3 [shape = 'u8[8192]{0}', space=vmem, size = 0x2000, scoped, tag = 'input window, operand 0, single buffered']
    #allocation4 [shape = 's32[1]{0}', space=sflag, size = 0x4, scoped, tag = 'scoped memory for tpu_custom_call.1']
    #allocation5 [shape = 's32[1]{0}', space=sflag, size = 0x4, scoped, tag = 'scoped memory for tpu_custom_call.1']
    #allocation6 [shape = 'u8[16384]{0}', space=vmem, size = 0x4000, scoped, tag = 'input window, operand 3, single buffered']
    #allocation7 [shape = 's32[1]{0}', space=sflag, size = 0x4, scoped, tag = 'scoped memory for tpu_custom_call.1']
    #allocation8 [shape = 'u8[16384]{0}', space=vmem, size = 0x4000, scoped, tag = 'input window, operand 5, single buffered']
    #allocation9 [shape = 'u8[32768]{0}', space=vmem, size = 0x8000, scoped, tag = 'input window, operand 9, single buffered']
    #allocation10 [shape = 's32[1]{0}', space=sflag, size = 0x4, scoped, tag = 'scoped memory for tpu_custom_call.1']
    #allocation11 [shape = 'u8[32768]{0}', space=vmem, size = 0x8000, scoped, tag = 'input window, operand 10, single buffered']
    #allocation12 [shape = 'u8[16384]{0}', space=vmem, size = 0x4000, scoped, tag = 'input window, operand 11, single buffered']
    #allocation13 [shape = 's32[1]{0}', space=sflag, size = 0x4, scoped, tag = 'scoped memory for tpu_custom_call.1']
    #allocation14 [shape = 'u8[1024]{0}', space=vmem, size = 0x400, scoped, tag = 'output window, operand 0, single buffered']
    %22 = vsyncpa [#allocation4], 0
    %23 = vsyncpa [#allocation7], 0
    %24 = vsyncpa [#allocation10], 0
    %25 = vsyncpa [#allocation13], 0
    %26 = vsyncpa [#allocation5], 0
    // Predicated region
    $region2: #{tpu_custom_call.1} parent=1 // pred_check
      _
    $region3: #{tpu_custom_call.1} parent=1 // pred_check_branch
      %28 = sbr.rel (0) target = $region5
    $region4: #{tpu_custom_call.1} parent=1 // pred_region
      %s30 = ssub.s32 256, 256
      %31 = vsyncadd [#allocation4], %s30
      %s32 = sshll.u32 [#allocation3], 4
      %s33 = int_to_ptr.vmem [resolvable:$true] %s32
      %38 = dma.hbm_to_vmem [thread:$0]  %s0, 256, %s33, [#allocation4], 128, 128, 8
    $region5: #{tpu_custom_call.1} parent=1 // pred_fallthru
      _
    // Predicated region
    $region6: #{tpu_custom_call.1} parent=1 // pred_check
      _
    $region7: #{tpu_custom_call.1} parent=1 // pred_check_branch
      %40 = sbr.rel (0) target = $region9
    $region8: #{tpu_custom_call.1} parent=1 // pred_region
      _
    $region9: #{tpu_custom_call.1} parent=1 // pred_fallthru
      _
    // Predicated region
    $region10: #{tpu_custom_call.1} parent=1 // pred_check
      _
    $region11: #{tpu_custom_call.1} parent=1 // pred_check_branch
      %42 = sbr.rel (0) target = $region13
    $region12: #{tpu_custom_call.1} parent=1 // pred_region
      _
    $region13: #{tpu_custom_call.1} parent=1 // pred_fallthru
      _
    // Predicated region
    $region14: #{tpu_custom_call.1} parent=1 // pred_check
      _
    $region15: #{tpu_custom_call.1} parent=1 // pred_check_branch
      %44 = sbr.rel (0) target = $region17
    $region16: #{tpu_custom_call.1} parent=1 // pred_region
      %s46 = ssub.s32 512, 512
      %47 = vsyncadd [#allocation7], %s46
      %s48 = sshll.u32 [#allocation6], 4
      %s49 = int_to_ptr.vmem [resolvable:$true] %s48
      %54 = dma.hbm_to_vmem [thread:$0]  %s3, 512, %s49, [#allocation7], 128, 128, 8
    $region17: #{tpu_custom_call.1} parent=1 // pred_fallthru
      _
    // Predicated region
    $region18: #{tpu_custom_call.1} parent=1 // pred_check
      _
    $region19: #{tpu_custom_call.1} parent=1 // pred_check_branch
      %56 = sbr.rel (0) target = $region21
    $region20: #{tpu_custom_call.1} parent=1 // pred_region
      _
    $region21: #{tpu_custom_call.1} parent=1 // pred_fallthru
      _
    // Predicated region
    $region22: #{tpu_custom_call.1} parent=1 // pred_check
      _
    $region23: #{tpu_custom_call.1} parent=1 // pred_check_branch
      %58 = sbr.rel (0) target = $region25
    $region24: #{tpu_custom_call.1} parent=1 // pred_region
      %s60 = ssub.s32 512, 512
      %61 = vsyncadd [#allocation7], %s60
      %s62 = sshll.u32 [#allocation8], 4
      %s63 = int_to_ptr.vmem [resolvable:$true] %s62
      %68 = dma.hbm_to_vmem [thread:$0]  %s5, 512, %s63, [#allocation7], 128, 128, 8
    $region25: #{tpu_custom_call.1} parent=1 // pred_fallthru
      _
    // Predicated region
    $region26: #{tpu_custom_call.1} parent=1 // pred_check
      _
    $region27: #{tpu_custom_call.1} parent=1 // pred_check_branch
      %70 = sbr.rel (0) target = $region29
    $region28: #{tpu_custom_call.1} parent=1 // pred_region
      _
    $region29: #{tpu_custom_call.1} parent=1 // pred_fallthru
      _
    // Predicated region
    $region30: #{tpu_custom_call.1} parent=1 // pred_check
      _
    $region31: #{tpu_custom_call.1} parent=1 // pred_check_branch
      %72 = sbr.rel (0) target = $region33
    $region32: #{tpu_custom_call.1} parent=1 // pred_region
      _
    $region33: #{tpu_custom_call.1} parent=1 // pred_fallthru
      _
    // Predicated region
    $region34: #{tpu_custom_call.1} parent=1 // pred_check
      _
    $region35: #{tpu_custom_call.1} parent=1 // pred_check_branch
      %74 = sbr.rel (0) target = $region37
    $region36: #{tpu_custom_call.1} parent=1 // pred_region
      _
    $region37: #{tpu_custom_call.1} parent=1 // pred_fallthru
      _
    // Predicated region
    $region38: #{tpu_custom_call.1} parent=1 // pred_check
      _
    $region39: #{tpu_custom_call.1} parent=1 // pred_check_branch
      %76 = sbr.rel (0) target = $region41
    $region40: #{tpu_custom_call.1} parent=1 // pred_region
      %s78 = ssub.s32 1024, 1024
      %79 = vsyncadd [#allocation10], %s78
      %s80 = sshll.u32 [#allocation9], 4
      %s81 = int_to_ptr.vmem [resolvable:$true] %s80
      %86 = dma.hbm_to_vmem [thread:$0]  %s9, 1024, %s81, [#allocation10], 128, 128, 8
    $region41: #{tpu_custom_call.1} parent=1 // pred_fallthru
      _
    // Predicated region
    $region42: #{tpu_custom_call.1} parent=1 // pred_check
      _
    $region43: #{tpu_custom_call.1} parent=1 // pred_check_branch
      %88 = sbr.rel (0) target = $region45
    $region44: #{tpu_custom_call.1} parent=1 // pred_region
      %s90 = ssub.s32 1024, 1024
      %91 = vsyncadd [#allocation10], %s90
      %s92 = sshll.u32 [#allocation11], 4
      %s93 = int_to_ptr.vmem [resolvable:$true] %s92
      %98 = dma.hbm_to_vmem [thread:$0]  %s10, 1024, %s93, [#allocation10], 128, 128, 8
    $region45: #{tpu_custom_call.1} parent=1 // pred_fallthru
      _
    // Predicated region
    $region46: #{tpu_custom_call.1} parent=1 // pred_check
      _
    $region47: #{tpu_custom_call.1} parent=1 // pred_check_branch
      %100 = sbr.rel (0) target = $region49
    $region48: #{tpu_custom_call.1} parent=1 // pred_region
      %s102 = ssub.s32 512, 512
      %103 = vsyncadd [#allocation13], %s102
      %s104 = sshll.u32 [#allocation12], 4
      %s105 = int_to_ptr.vmem [resolvable:$true] %s104
      %110 = dma.hbm_to_vmem [thread:$0]  %s11, 512, %s105, [#allocation13], 128, 128, 8
    $region49: #{tpu_custom_call.1} parent=1 // pred_fallthru
      _
    // Predicated region
    $region50: #{tpu_custom_call.1} parent=1 // pred_check
      _
    $region51: #{tpu_custom_call.1} parent=1 // pred_check_branch
      %112 = sbr.rel (0) target = $region53
    $region52: #{tpu_custom_call.1} parent=1 // pred_region
      _
    $region53: #{tpu_custom_call.1} parent=1 // pred_fallthru
      _
    // Predicated region
    $region54: #{tpu_custom_call.1} parent=1 // pred_check
      _
    $region55: #{tpu_custom_call.1} parent=1 // pred_check_branch
      %114 = sbr.rel (0) target = $region57
    $region56: #{tpu_custom_call.1} parent=1 // pred_region
      %115 = dma.done [#allocation4], 256
    $region57: #{tpu_custom_call.1} parent=1 // pred_fallthru
      _
    // Predicated region
    $region58: #{tpu_custom_call.1} parent=1 // pred_check
      _
    $region59: #{tpu_custom_call.1} parent=1 // pred_check_branch
      %117 = sbr.rel (0) target = $region61
    $region60: #{tpu_custom_call.1} parent=1 // pred_region
      %118 = dma.done [#allocation7], 512
    $region61: #{tpu_custom_call.1} parent=1 // pred_fallthru
      _
    // Predicated region
    $region62: #{tpu_custom_call.1} parent=1 // pred_check
      _
    $region63: #{tpu_custom_call.1} parent=1 // pred_check_branch
      %120 = sbr.rel (0) target = $region65
    $region64: #{tpu_custom_call.1} parent=1 // pred_region
      %121 = dma.done [#allocation7], 512
    $region65: #{tpu_custom_call.1} parent=1 // pred_fallthru
      _
    // Predicated region
    $region66: #{tpu_custom_call.1} parent=1 // pred_check
      _
    $region67: #{tpu_custom_call.1} parent=1 // pred_check_branch
      %123 = sbr.rel (0) target = $region69
    $region68: #{tpu_custom_call.1} parent=1 // pred_region
      %124 = dma.done [#allocation10], 1024
    $region69: #{tpu_custom_call.1} parent=1 // pred_fallthru
      _
    // Predicated region
    $region70: #{tpu_custom_call.1} parent=1 // pred_check
      _
    $region71: #{tpu_custom_call.1} parent=1 // pred_check_branch
      %126 = sbr.rel (0) target = $region73
    $region72: #{tpu_custom_call.1} parent=1 // pred_region
      %127 = dma.done [#allocation10], 1024
    $region73: #{tpu_custom_call.1} parent=1 // pred_fallthru
      _
    // Predicated region
    $region74: #{tpu_custom_call.1} parent=1 // pred_check
      _
    $region75: #{tpu_custom_call.1} parent=1 // pred_check_branch
      %129 = sbr.rel (0) target = $region77
    $region76: #{tpu_custom_call.1} parent=1 // pred_region
      %130 = dma.done [#allocation13], 512
    $region77: #{tpu_custom_call.1} parent=1 // pred_fallthru
      _
    %v131 = vld [vmem:[#allocation3] sm:$0xff]
    %v132 = vld [vmem:[#allocation3 + $0x8] sm:$0xff]
    %v133 = vld [vmem:[%s1] sm:$0x3]
    %v134 = vld [vmem:[%s2] sm:$0x3]
    %v135 = vld [vmem:[#allocation6] sm:$0xff]
    %v136 = vld [vmem:[#allocation6 + $0x8] sm:$0xff]
    %v137 = vld [vmem:[#allocation6 + $0x10] sm:$0xff]
    %v138 = vld [vmem:[#allocation6 + $0x18] sm:$0xff]
    %v139 = vld [vmem:[%s4] sm:$0x1]
    %v141 = vlaneseq
    %v142 = vshrl.u32 %v141, 7
    %v143 = vsub.s32 0, %v142
    %v144 = vrot.slane %v139, %v143
    %vm146 = vcmask 261120
    %v148 = vsel %vm146, %v131, 0
    %v151 = vsel %vm146, %v132, 0
    %153 = vmatprep.subr.mxu0 0.0
    %154 = vmatpush1.msra.mxu0 0.0
    %155 = vmatprep.subr.mxu0 0.0
    %156 = vmatpush1.msra.mxu0 0.0
    %157 = vmatprep.subr.mxu0 0.0
    %158 = vmatpush1.msra.mxu0 0.0
    %159 = vmatprep.subr.mxu0 0.0
    %160 = vmatpush1.msra.mxu0 0.0
    %161 = vmatprep.subr.mxu0 0.0
    %162 = vmatpush1.msra.mxu0 0.0
    %163 = vmatprep.subr.mxu0 0.0
    %164 = vmatpush1.msra.mxu0 0.0
    %165 = vmatprep.subr.mxu0 0.0
    %166 = vmatpush1.msra.mxu0 0.0
    %167 = vmatprep.subr.mxu0 0.0
    %168 = vmatpush1.msra.mxu0 0.0
    %169 = vmatprep.subr.mxu0 0.0
    %170 = vmatpush1.msra.mxu0 0.0
    %171 = vmatprep.subr.mxu0 0.0
    %172 = vmatpush1.msra.mxu0 0.0
    %173 = vmatprep.subr.mxu0 0.0
    %174 = vmatpush1.msra.mxu0 0.0
    %175 = vmatprep.subr.mxu0 0.0
    %176 = vmatpush1.msra.mxu0 0.0
    %177 = vmatprep.subr.mxu0 0.0
    %178 = vmatpush1.msra.mxu0 %v138
    %179 = vmatprep.subr.mxu0 0.0
    %180 = vmatpush1.msra.mxu0 %v137
    %181 = vmatprep.subr.mxu0 0.0
    %182 = vmatpush1.msra.mxu0 %v136
    %183 = vmatprep.subr.mxu0 0.0
    %184 = vmatpush1.msra.mxu0 %v135
    %185 = vmatprep.subr.mxu0 0.0
    %186 = vmatpush2.msra.mxu0 0.0
    %187 = vmatprep.subr.mxu0 0.0
    %188 = vmatpush2.msra.mxu0 0.0
    %189 = vmatprep.subr.mxu0 0.0
    %190 = vmatpush2.msra.mxu0 0.0
    %191 = vmatprep.subr.mxu0 0.0
    %192 = vmatpush2.msra.mxu0 0.0
    %193 = vmatprep.subr.mxu0 0.0
    %194 = vmatpush2.msra.mxu0 0.0
    %195 = vmatprep.subr.mxu0 0.0
    %196 = vmatpush2.msra.mxu0 0.0
    %197 = vmatprep.subr.mxu0 0.0
    %198 = vmatpush2.msra.mxu0 0.0
    %199 = vmatprep.subr.mxu0 0.0
    %200 = vmatpush2.msra.mxu0 0.0
    %201 = vmatprep.subr.mxu0 0.0
    %202 = vmatpush2.msra.mxu0 0.0
    %203 = vmatprep.subr.mxu0 0.0
    %204 = vmatpush2.msra.mxu0 0.0
    %205 = vmatprep.subr.mxu0 0.0
    %206 = vmatpush2.msra.mxu0 0.0
    %207 = vmatprep.subr.mxu0 0.0
    %208 = vmatpush2.msra.mxu0 0.0
    %209 = vmatprep.subr.mxu0 0.0
    %210 = vmatpush2.msra.mxu0 0.0
    %211 = vmatprep.subr.mxu0 0.0
    %212 = vmatpush2.msra.mxu0 0.0
    %213 = vmatprep.subr.mxu0 0.0
    %214 = vmatpush2.msra.mxu0 0.0
    %215 = vmatprep.subr.mxu0 0.0
    %216 = vmatpush2.msra.mxu0 0.0
    %217 = vmatprep.mubr.f32.mxu0 0.0
    %218 = vmatmul.mubr.f32.gmra.mxu0 %v148
    %v219 = vpop.f32.mrf.mxu0
    %v220 = vadd.f32 %v144, %v219
    %v221 = vpop.f32.mrf.mxu0
    %222 = vmatprep.mubr.f32.mxu0 0.0
    %223 = vmatmul.mubr.f32.gmra.mxu0 %v151
    %v224 = vpop.f32.mrf.mxu0
    %v225 = vadd.f32 %v144, %v224
    %v226 = vpop.f32.mrf.mxu0
    %227 = vdwg.mxu0
    %v228 = vld [vmem:[#allocation8] sm:$0xff]
    %v229 = vld [vmem:[#allocation8 + $0x8] sm:$0xff]
    %v230 = vld [vmem:[#allocation8 + $0x10] sm:$0xff]
    %v231 = vld [vmem:[#allocation8 + $0x18] sm:$0xff]
    %v232 = vld [vmem:[%s6] sm:$0x1]
    %v234 = vlaneseq
    %v235 = vshrl.u32 %v234, 7
    %v236 = vsub.s32 0, %v235
    %v237 = vrot.slane %v232, %v236
    %v240 = vsel %vm146, %v133, 0
    %242 = vmatprep.subr.mxu0 0.0
    %243 = vmatpush1.msra.mxu0 0.0
    %244 = vmatprep.subr.mxu0 0.0
    %245 = vmatpush1.msra.mxu0 0.0
    %246 = vmatprep.subr.mxu0 0.0
    %247 = vmatpush1.msra.mxu0 0.0
    %248 = vmatprep.subr.mxu0 0.0
    %249 = vmatpush1.msra.mxu0 0.0
    %250 = vmatprep.subr.mxu0 0.0
    %251 = vmatpush1.msra.mxu0 0.0
    %252 = vmatprep.subr.mxu0 0.0
    %253 = vmatpush1.msra.mxu0 0.0
    %254 = vmatprep.subr.mxu0 0.0
    %255 = vmatpush1.msra.mxu0 0.0
    %256 = vmatprep.subr.mxu0 0.0
    %257 = vmatpush1.msra.mxu0 0.0
    %258 = vmatprep.subr.mxu0 0.0
    %259 = vmatpush1.msra.mxu0 0.0
    %260 = vmatprep.subr.mxu0 0.0
    %261 = vmatpush1.msra.mxu0 0.0
    %262 = vmatprep.subr.mxu0 0.0
    %263 = vmatpush1.msra.mxu0 0.0
    %264 = vmatprep.subr.mxu0 0.0
    %265 = vmatpush1.msra.mxu0 0.0
    %266 = vmatprep.subr.mxu0 0.0
    %267 = vmatpush1.msra.mxu0 %v231
    %268 = vmatprep.subr.mxu0 0.0
    %269 = vmatpush1.msra.mxu0 %v230
    %270 = vmatprep.subr.mxu0 0.0
    %271 = vmatpush1.msra.mxu0 %v229
    %272 = vmatprep.subr.mxu0 0.0
    %273 = vmatpush1.msra.mxu0 %v228
    %274 = vmatprep.subr.mxu0 0.0
    %275 = vmatpush2.msra.mxu0 0.0
    %276 = vmatprep.subr.mxu0 0.0
    %277 = vmatpush2.msra.mxu0 0.0
    %278 = vmatprep.subr.mxu0 0.0
    %279 = vmatpush2.msra.mxu0 0.0
    %280 = vmatprep.subr.mxu0 0.0
    %281 = vmatpush2.msra.mxu0 0.0
    %282 = vmatprep.subr.mxu0 0.0
    %283 = vmatpush2.msra.mxu0 0.0
    %284 = vmatprep.subr.mxu0 0.0
    %285 = vmatpush2.msra.mxu0 0.0
    %286 = vmatprep.subr.mxu0 0.0
    %287 = vmatpush2.msra.mxu0 0.0
    %288 = vmatprep.subr.mxu0 0.0
    %289 = vmatpush2.msra.mxu0 0.0
    %290 = vmatprep.subr.mxu0 0.0
    %291 = vmatpush2.msra.mxu0 0.0
    %292 = vmatprep.subr.mxu0 0.0
    %293 = vmatpush2.msra.mxu0 0.0
    %294 = vmatprep.subr.mxu0 0.0
    %295 = vmatpush2.msra.mxu0 0.0
    %296 = vmatprep.subr.mxu0 0.0
    %297 = vmatpush2.msra.mxu0 0.0
    %298 = vmatprep.subr.mxu0 0.0
    %299 = vmatpush2.msra.mxu0 0.0
    %300 = vmatprep.subr.mxu0 0.0
    %301 = vmatpush2.msra.mxu0 0.0
    %302 = vmatprep.subr.mxu0 0.0
    %303 = vmatpush2.msra.mxu0 0.0
    %304 = vmatprep.subr.mxu0 0.0
    %305 = vmatpush2.msra.mxu0 0.0
    %306 = vmatprep.mubr.f32.mxu0 0.0
    %307 = vmatmul.mubr.f32.gmra.mxu0 %v240
    %v308 = vpop.f32.mrf.mxu0
    %v309 = vadd.f32 %v237, %v308
    %v310 = vpop.f32.mrf.mxu0
    %311 = vdwg.mxu0
    %v314 = vunpack.c.l.s4 1966171168
    %v315 = vunpack.c.0.s8 %v314
    %v316 = vlaneseq
    %v317 = vshrl.u32 %v316, 7
    %v318 = vsub.s32 %v315, %v317
    %v319 = vrot.slane %v309, %v318
    %v320 = vcombine.high %v319, %v319
    %v322 = vunpack.c.l.s4 1966171168
    %v323 = vunpack.c.0.s8 %v322
    %v324 = vlaneseq
    %v325 = vshrl.u32 %v324, 7
    %v326 = vsub.s32 %v323, %v325
    %v327 = vrot.slane %v319, %v326
    %v329 = vunpack.c.l.s4 1966171168
    %v330 = vunpack.c.0.s8 %v329
    %v331 = vlaneseq
    %v332 = vshrl.u32 %v331, 7
    %v333 = vsub.s32 %v330, %v332
    %v334 = vrot.slane %v320, %v333
    %v335 = vlaneseq
    %v336 = vshrl.u32 %v335, 7
    %v337 = vsub.s32 0, %v336
    %v338 = vrot.slane %v327, %v337
    %v339 = vlaneseq
    %v340 = vshrl.u32 %v339, 7
    %v341 = vsub.s32 0, %v340
    %v342 = vrot.slane %v334, %v341
    %v345 = vadd.f32 %v220, %v338
    %v346 = vadd.f32 %v225, %v342
    %v347 = vtanh.pop %v345
    %v348 = vtanh.pop %v346
    %v349 = vld [vmem:[%s7] sm:$0x1]
    %v351 = vlaneseq
    %v352 = vshrl.u32 %v351, 7
    %v353 = vsub.s32 0, %v352
    %v354 = vrot.slane %v349, %v353
    %v356 = vmul.f32 %v347, %v354
    %v357 = vmul.f32 %v348, %v354
    %v358 = vsel %vm146, %v356, 0.0
    %359 = vadd.xlane.f32.xlu0 %v358
    %v360 = vpop.xlane.xlu0 %359
    %v361 = vsel %vm146, %v357, 0.0
    %362 = vadd.xlane.f32.xlu0 %v361
    %v363 = vpop.xlane.xlu0 %362
    %v364 = vld [vmem:[#allocation2] sm:$0x1]
    %v366 = vlaneseq
    %v367 = vshrl.u32 %v366, 7
    %v368 = vsub.s32 0, %v367
    %v369 = vrot.slane %v364, %v368
    %v371 = vadd.f32 %v360, %v369
    %v372 = vadd.f32 %v363, %v369
    %vm373 = vcmask 7168
    %v374 = vsel %vm373, %v371, -inf
    %v375 = vrot.slane %v374, 4
    %v376 = vmax.f32 %v374, %v375
    %v377 = vrot.slane %v376, 2
    %v378 = vmax.f32 %v376, %v377
    %v379 = vrot.slane %v378, 1
    %v380 = vmax.f32 %v378, %v379
    %v381 = vsel %vm373, %v372, -inf
    %v382 = vrot.slane %v381, 4
    %v383 = vmax.f32 %v381, %v382
    %v384 = vrot.slane %v383, 2
    %v385 = vmax.f32 %v383, %v384
    %v386 = vrot.slane %v385, 1
    %v387 = vmax.f32 %v385, %v386
    %v388 = vsub.f32 %v371, %v380
    %v389 = vsub.f32 %v372, %v387
    %v390 = vmul.f32 %v388, 1.442695
    %v391 = vpow.pop %v390
    %v392 = vmul.f32 %v389, 1.442695
    %v393 = vpow.pop %v392
    %v394 = vsel %vm373, %v391, 0.0
    %v395 = vrot.slane %v394, 4
    %v396 = vadd.f32 %v394, %v395
    %v397 = vrot.slane %v396, 2
    %v398 = vadd.f32 %v396, %v397
    %v399 = vrot.slane %v398, 1
    %v400 = vadd.f32 %v398, %v399
    %v401 = vsel %vm373, %v393, 0.0
    %v402 = vrot.slane %v401, 4
    %v403 = vadd.f32 %v401, %v402
    %v404 = vrot.slane %v403, 2
    %v405 = vadd.f32 %v403, %v404
    %v406 = vrot.slane %v405, 1
    %v407 = vadd.f32 %v405, %v406
    %v408 = vrcp.pop %v400
    %v409 = vrcp.pop %v407
    %v410 = vmul.f32 %v391, %v408
    %v411 = vmul.f32 %v393, %v409
    %412 = vst.msk [vmem:[%s14] sm:$0xff] %vm373, %v410
    %413 = vst.msk [vmem:[%s14 + $0x8] sm:$0xff] %vm373, %v411
    %415 = vset.pattern.permute.xlu0 0
    %416 = vperm.xlu0 %415, %v410
    %v417 = vpop.permute.xlu0 %416
    %420 = vset.pattern.permute.xlu0 0
    %421 = vperm.xlu0 %420, %v411
    %v422 = vpop.permute.xlu0 %421
    %v424 = vmul.f32 %v417, %v131
    %v425 = vmul.f32 %v422, %v132
    %v426 = vsel %vm146, %v424, 0.0
    %v427 = vrot.slane %v426, 4
    %v428 = vadd.f32 %v426, %v427
    %v429 = vrot.slane %v428, 2
    %v430 = vadd.f32 %v428, %v429
    %v431 = vrot.slane %v430, 1
    %v432 = vadd.f32 %v430, %v431
    %v433 = vsel %vm146, %v425, 0.0
    %v434 = vrot.slane %v433, 4
    %v435 = vadd.f32 %v433, %v434
    %v436 = vrot.slane %v435, 2
    %v437 = vadd.f32 %v435, %v436
    %v438 = vrot.slane %v437, 1
    %v439 = vadd.f32 %v437, %v438
    %v440 = vld [vmem:[#allocation9] sm:$0xff]
    %v441 = vld [vmem:[#allocation9 + $0x8] sm:$0xff]
    %v442 = vld [vmem:[#allocation9 + $0x10] sm:$0xff]
    %v443 = vld [vmem:[#allocation9 + $0x18] sm:$0xff]
    %v444 = vld [vmem:[#allocation11] sm:$0xff]
    %v445 = vld [vmem:[#allocation11 + $0x8] sm:$0xff]
    %v446 = vld [vmem:[#allocation11 + $0x10] sm:$0xff]
    %v447 = vld [vmem:[#allocation11 + $0x18] sm:$0xff]
    %448 = vmatprep.subr.mxu0 0.0
    %449 = vmatpush1.msra.mxu0 0.0
    %450 = vmatprep.subr.mxu0 0.0
    %451 = vmatpush1.msra.mxu0 0.0
    %452 = vmatprep.subr.mxu0 0.0
    %453 = vmatpush1.msra.mxu0 0.0
    %454 = vmatprep.subr.mxu0 0.0
    %455 = vmatpush1.msra.mxu0 0.0
    %456 = vmatprep.subr.mxu0 0.0
    %457 = vmatpush1.msra.mxu0 0.0
    %458 = vmatprep.subr.mxu0 0.0
    %459 = vmatpush1.msra.mxu0 0.0
    %460 = vmatprep.subr.mxu0 0.0
    %461 = vmatpush1.msra.mxu0 0.0
    %462 = vmatprep.subr.mxu0 0.0
    %463 = vmatpush1.msra.mxu0 0.0
    %464 = vmatprep.subr.mxu0 0.0
    %465 = vmatpush1.msra.mxu0 0.0
    %466 = vmatprep.subr.mxu0 0.0
    %467 = vmatpush1.msra.mxu0 0.0
    %468 = vmatprep.subr.mxu0 0.0
    %469 = vmatpush1.msra.mxu0 0.0
    %470 = vmatprep.subr.mxu0 0.0
    %471 = vmatpush1.msra.mxu0 0.0
    %472 = vmatprep.subr.mxu0 0.0
    %473 = vmatpush1.msra.mxu0 %v447
    %474 = vmatprep.subr.mxu0 0.0
    %475 = vmatpush1.msra.mxu0 %v446
    %476 = vmatprep.subr.mxu0 0.0
    %477 = vmatpush1.msra.mxu0 %v445
    %478 = vmatprep.subr.mxu0 0.0
    %479 = vmatpush1.msra.mxu0 %v444
    %480 = vmatprep.subr.mxu0 0.0
    %481 = vmatpush2.msra.mxu0 0.0
    %482 = vmatprep.subr.mxu0 0.0
    %483 = vmatpush2.msra.mxu0 0.0
    %484 = vmatprep.subr.mxu0 0.0
    %485 = vmatpush2.msra.mxu0 0.0
    %486 = vmatprep.subr.mxu0 0.0
    %487 = vmatpush2.msra.mxu0 0.0
    %488 = vmatprep.subr.mxu0 0.0
    %489 = vmatpush2.msra.mxu0 0.0
    %490 = vmatprep.subr.mxu0 0.0
    %491 = vmatpush2.msra.mxu0 0.0
    %492 = vmatprep.subr.mxu0 0.0
    %493 = vmatpush2.msra.mxu0 0.0
    %494 = vmatprep.subr.mxu0 0.0
    %495 = vmatpush2.msra.mxu0 0.0
    %496 = vmatprep.subr.mxu0 0.0
    %497 = vmatpush2.msra.mxu0 0.0
    %498 = vmatprep.subr.mxu0 0.0
    %499 = vmatpush2.msra.mxu0 0.0
    %500 = vmatprep.subr.mxu0 0.0
    %501 = vmatpush2.msra.mxu0 0.0
    %502 = vmatprep.subr.mxu0 0.0
    %503 = vmatpush2.msra.mxu0 0.0
    %504 = vmatprep.subr.mxu0 0.0
    %505 = vmatpush2.msra.mxu0 0.0
    %506 = vmatprep.subr.mxu0 0.0
    %507 = vmatpush2.msra.mxu0 0.0
    %508 = vmatprep.subr.mxu0 0.0
    %509 = vmatpush2.msra.mxu0 0.0
    %510 = vmatprep.subr.mxu0 0.0
    %511 = vmatpush2.msra.mxu0 0.0
    %512 = vmatprep.mubr.f32.mxu0 0.0
    %513 = vmatmul.mubr.f32.gmra.mxu0 %v240
    %v514 = vpop.f32.mrf.mxu0
    %v515 = vadd.f32 0.0, %v514
    %v516 = vpop.f32.mrf.mxu0
    %517 = vdwg.mxu0
    %vm520 = vcmask 1041409
    %v521 = vsel %vm520, %v439, %v432
    %v522 = vsel %vm146, %v521, 0
    %524 = vmatprep.subr.mxu0 0.0
    %525 = vmatpush1.msra.mxu0 0.0
    %526 = vmatprep.subr.mxu0 0.0
    %527 = vmatpush1.msra.mxu0 0.0
    %528 = vmatprep.subr.mxu0 0.0
    %529 = vmatpush1.msra.mxu0 0.0
    %530 = vmatprep.subr.mxu0 0.0
    %531 = vmatpush1.msra.mxu0 0.0
    %532 = vmatprep.subr.mxu0 0.0
    %533 = vmatpush1.msra.mxu0 0.0
    %534 = vmatprep.subr.mxu0 0.0
    %535 = vmatpush1.msra.mxu0 0.0
    %536 = vmatprep.subr.mxu0 0.0
    %537 = vmatpush1.msra.mxu0 0.0
    %538 = vmatprep.subr.mxu0 0.0
    %539 = vmatpush1.msra.mxu0 0.0
    %540 = vmatprep.subr.mxu0 0.0
    %541 = vmatpush1.msra.mxu0 0.0
    %542 = vmatprep.subr.mxu0 0.0
    %543 = vmatpush1.msra.mxu0 0.0
    %544 = vmatprep.subr.mxu0 0.0
    %545 = vmatpush1.msra.mxu0 0.0
    %546 = vmatprep.subr.mxu0 0.0
    %547 = vmatpush1.msra.mxu0 0.0
    %548 = vmatprep.subr.mxu0 0.0
    %549 = vmatpush1.msra.mxu0 %v443
    %550 = vmatprep.subr.mxu0 0.0
    %551 = vmatpush1.msra.mxu0 %v442
    %552 = vmatprep.subr.mxu0 0.0
    %553 = vmatpush1.msra.mxu0 %v441
    %554 = vmatprep.subr.mxu0 0.0
    %555 = vmatpush1.msra.mxu0 %v440
    %556 = vmatprep.subr.mxu0 0.0
    %557 = vmatpush2.msra.mxu0 0.0
    %558 = vmatprep.subr.mxu0 0.0
    %559 = vmatpush2.msra.mxu0 0.0
    %560 = vmatprep.subr.mxu0 0.0
    %561 = vmatpush2.msra.mxu0 0.0
    %562 = vmatprep.subr.mxu0 0.0
    %563 = vmatpush2.msra.mxu0 0.0
    %564 = vmatprep.subr.mxu0 0.0
    %565 = vmatpush2.msra.mxu0 0.0
    %566 = vmatprep.subr.mxu0 0.0
    %567 = vmatpush2.msra.mxu0 0.0
    %568 = vmatprep.subr.mxu0 0.0
    %569 = vmatpush2.msra.mxu0 0.0
    %570 = vmatprep.subr.mxu0 0.0
    %571 = vmatpush2.msra.mxu0 0.0
    %572 = vmatprep.subr.mxu0 0.0
    %573 = vmatpush2.msra.mxu0 0.0
    %574 = vmatprep.subr.mxu0 0.0
    %575 = vmatpush2.msra.mxu0 0.0
    %576 = vmatprep.subr.mxu0 0.0
    %577 = vmatpush2.msra.mxu0 0.0
    %578 = vmatprep.subr.mxu0 0.0
    %579 = vmatpush2.msra.mxu0 0.0
    %580 = vmatprep.subr.mxu0 0.0
    %581 = vmatpush2.msra.mxu0 0.0
    %582 = vmatprep.subr.mxu0 0.0
    %583 = vmatpush2.msra.mxu0 0.0
    %584 = vmatprep.subr.mxu0 0.0
    %585 = vmatpush2.msra.mxu0 0.0
    %586 = vmatprep.subr.mxu0 0.0
    %587 = vmatpush2.msra.mxu0 0.0
    %588 = vmatprep.mubr.f32.mxu0 0.0
    %589 = vmatmul.mubr.f32.gmra.mxu0 %v522
    %v590 = vpop.f32.mrf.mxu0
    %v591 = vadd.f32 %v515, %v590
    %v592 = vpop.f32.mrf.mxu0
    %593 = vdwg.mxu0
    %v594 = vld [vmem:[#allocation12] sm:$0xff]
    %v595 = vld [vmem:[#allocation12 + $0x8] sm:$0xff]
    %vm596 = vcmask 130048
    %v598 = vsel %vm596, %v134, 0
    %600 = vmatprep.subr.mxu0 0.0
    %601 = vmatpush1.msra.mxu0 0.0
    %602 = vmatprep.subr.mxu0 0.0
    %603 = vmatpush1.msra.mxu0 0.0
    %604 = vmatprep.subr.mxu0 0.0
    %605 = vmatpush1.msra.mxu0 0.0
    %606 = vmatprep.subr.mxu0 0.0
    %607 = vmatpush1.msra.mxu0 0.0
    %608 = vmatprep.subr.mxu0 0.0
    %609 = vmatpush1.msra.mxu0 0.0
    %610 = vmatprep.subr.mxu0 0.0
    %611 = vmatpush1.msra.mxu0 0.0
    %612 = vmatprep.subr.mxu0 0.0
    %613 = vmatpush1.msra.mxu0 0.0
    %614 = vmatprep.subr.mxu0 0.0
    %615 = vmatpush1.msra.mxu0 0.0
    %616 = vmatprep.subr.mxu0 0.0
    %617 = vmatpush1.msra.mxu0 0.0
    %618 = vmatprep.subr.mxu0 0.0
    %619 = vmatpush1.msra.mxu0 0.0
    %620 = vmatprep.subr.mxu0 0.0
    %621 = vmatpush1.msra.mxu0 0.0
    %622 = vmatprep.subr.mxu0 0.0
    %623 = vmatpush1.msra.mxu0 0.0
    %624 = vmatprep.subr.mxu0 0.0
    %625 = vmatpush1.msra.mxu0 0.0
    %626 = vmatprep.subr.mxu0 0.0
    %627 = vmatpush1.msra.mxu0 0.0
    %628 = vmatprep.subr.mxu0 0.0
    %629 = vmatpush1.msra.mxu0 %v595
    %630 = vmatprep.subr.mxu0 0.0
    %631 = vmatpush1.msra.mxu0 %v594
    %632 = vmatprep.subr.mxu0 0.0
    %633 = vmatpush2.msra.mxu0 0.0
    %634 = vmatprep.subr.mxu0 0.0
    %635 = vmatpush2.msra.mxu0 0.0
    %636 = vmatprep.subr.mxu0 0.0
    %637 = vmatpush2.msra.mxu0 0.0
    %638 = vmatprep.subr.mxu0 0.0
    %639 = vmatpush2.msra.mxu0 0.0
    %640 = vmatprep.subr.mxu0 0.0
    %641 = vmatpush2.msra.mxu0 0.0
    %642 = vmatprep.subr.mxu0 0.0
    %643 = vmatpush2.msra.mxu0 0.0
    %644 = vmatprep.subr.mxu0 0.0
    %645 = vmatpush2.msra.mxu0 0.0
    %646 = vmatprep.subr.mxu0 0.0
    %647 = vmatpush2.msra.mxu0 0.0
    %648 = vmatprep.subr.mxu0 0.0
    %649 = vmatpush2.msra.mxu0 0.0
    %650 = vmatprep.subr.mxu0 0.0
    %651 = vmatpush2.msra.mxu0 0.0
    %652 = vmatprep.subr.mxu0 0.0
    %653 = vmatpush2.msra.mxu0 0.0
    %654 = vmatprep.subr.mxu0 0.0
    %655 = vmatpush2.msra.mxu0 0.0
    %656 = vmatprep.subr.mxu0 0.0
    %657 = vmatpush2.msra.mxu0 0.0
    %658 = vmatprep.subr.mxu0 0.0
    %659 = vmatpush2.msra.mxu0 0.0
    %660 = vmatprep.subr.mxu0 0.0
    %661 = vmatpush2.msra.mxu0 0.0
    %662 = vmatprep.subr.mxu0 0.0
    %663 = vmatpush2.msra.mxu0 0.0
    %664 = vmatprep.mubr.f32.mxu0 0.0
    %665 = vmatmul.mubr.f32.gmra.mxu0 %v598
    %v666 = vpop.f32.mrf.mxu0
    %v667 = vadd.f32 0.0, %v666
    %v668 = vpop.f32.mrf.mxu0
    %669 = vdwg.mxu0
    %v670 = vadd.f32 %v591, %v667
    %v671 = vld [vmem:[%s12] sm:$0x1]
    %v673 = vlaneseq
    %v674 = vshrl.u32 %v673, 7
    %v675 = vsub.s32 0, %v674
    %v676 = vrot.slane %v671, %v675
    %v678 = vadd.f32 %v670, %v676
    %s679 = scalar_lea.vmem [#allocation9], 32
    %v680 = vld [vmem:[%s679] sm:$0xff]
    %v681 = vld [vmem:[%s679 + $0x8] sm:$0xff]
    %v682 = vld [vmem:[%s679 + $0x10] sm:$0xff]
    %v683 = vld [vmem:[%s679 + $0x18] sm:$0xff]
    %s684 = scalar_lea.vmem [#allocation11], 32
    %v685 = vld [vmem:[%s684] sm:$0xff]
    %v686 = vld [vmem:[%s684 + $0x8] sm:$0xff]
    %v687 = vld [vmem:[%s684 + $0x10] sm:$0xff]
    %v688 = vld [vmem:[%s684 + $0x18] sm:$0xff]
    %689 = vmatprep.subr.mxu0 0.0
    %690 = vmatpush1.msra.mxu0 0.0
    %691 = vmatprep.subr.mxu0 0.0
    %692 = vmatpush1.msra.mxu0 0.0
    %693 = vmatprep.subr.mxu0 0.0
    %694 = vmatpush1.msra.mxu0 0.0
    %695 = vmatprep.subr.mxu0 0.0
    %696 = vmatpush1.msra.mxu0 0.0
    %697 = vmatprep.subr.mxu0 0.0
    %698 = vmatpush1.msra.mxu0 0.0
    %699 = vmatprep.subr.mxu0 0.0
    %700 = vmatpush1.msra.mxu0 0.0
    %701 = vmatprep.subr.mxu0 0.0
    %702 = vmatpush1.msra.mxu0 0.0
    %703 = vmatprep.subr.mxu0 0.0
    %704 = vmatpush1.msra.mxu0 0.0
    %705 = vmatprep.subr.mxu0 0.0
    %706 = vmatpush1.msra.mxu0 0.0
    %707 = vmatprep.subr.mxu0 0.0
    %708 = vmatpush1.msra.mxu0 0.0
    %709 = vmatprep.subr.mxu0 0.0
    %710 = vmatpush1.msra.mxu0 0.0
    %711 = vmatprep.subr.mxu0 0.0
    %712 = vmatpush1.msra.mxu0 0.0
    %713 = vmatprep.subr.mxu0 0.0
    %714 = vmatpush1.msra.mxu0 %v688
    %715 = vmatprep.subr.mxu0 0.0
    %716 = vmatpush1.msra.mxu0 %v687
    %717 = vmatprep.subr.mxu0 0.0
    %718 = vmatpush1.msra.mxu0 %v686
    %719 = vmatprep.subr.mxu0 0.0
    %720 = vmatpush1.msra.mxu0 %v685
    %721 = vmatprep.subr.mxu0 0.0
    %722 = vmatpush2.msra.mxu0 0.0
    %723 = vmatprep.subr.mxu0 0.0
    %724 = vmatpush2.msra.mxu0 0.0
    %725 = vmatprep.subr.mxu0 0.0
    %726 = vmatpush2.msra.mxu0 0.0
    %727 = vmatprep.subr.mxu0 0.0
    %728 = vmatpush2.msra.mxu0 0.0
    %729 = vmatprep.subr.mxu0 0.0
    %730 = vmatpush2.msra.mxu0 0.0
    %731 = vmatprep.subr.mxu0 0.0
    %732 = vmatpush2.msra.mxu0 0.0
    %733 = vmatprep.subr.mxu0 0.0
    %734 = vmatpush2.msra.mxu0 0.0
    %735 = vmatprep.subr.mxu0 0.0
    %736 = vmatpush2.msra.mxu0 0.0
    %737 = vmatprep.subr.mxu0 0.0
    %738 = vmatpush2.msra.mxu0 0.0
    %739 = vmatprep.subr.mxu0 0.0
    %740 = vmatpush2.msra.mxu0 0.0
    %741 = vmatprep.subr.mxu0 0.0
    %742 = vmatpush2.msra.mxu0 0.0
    %743 = vmatprep.subr.mxu0 0.0
    %744 = vmatpush2.msra.mxu0 0.0
    %745 = vmatprep.subr.mxu0 0.0
    %746 = vmatpush2.msra.mxu0 0.0
    %747 = vmatprep.subr.mxu0 0.0
    %748 = vmatpush2.msra.mxu0 0.0
    %749 = vmatprep.subr.mxu0 0.0
    %750 = vmatpush2.msra.mxu0 0.0
    %751 = vmatprep.subr.mxu0 0.0
    %752 = vmatpush2.msra.mxu0 0.0
    %753 = vmatprep.mubr.f32.mxu0 0.0
    %754 = vmatmul.mubr.f32.gmra.mxu0 %v240
    %v755 = vpop.f32.mrf.mxu0
    %v756 = vadd.f32 0.0, %v755
    %v757 = vpop.f32.mrf.mxu0
    %758 = vdwg.mxu0
    %759 = vmatprep.subr.mxu0 0.0
    %760 = vmatpush1.msra.mxu0 0.0
    %761 = vmatprep.subr.mxu0 0.0
    %762 = vmatpush1.msra.mxu0 0.0
    %763 = vmatprep.subr.mxu0 0.0
    %764 = vmatpush1.msra.mxu0 0.0
    %765 = vmatprep.subr.mxu0 0.0
    %766 = vmatpush1.msra.mxu0 0.0
    %767 = vmatprep.subr.mxu0 0.0
    %768 = vmatpush1.msra.mxu0 0.0
    %769 = vmatprep.subr.mxu0 0.0
    %770 = vmatpush1.msra.mxu0 0.0
    %771 = vmatprep.subr.mxu0 0.0
    %772 = vmatpush1.msra.mxu0 0.0
    %773 = vmatprep.subr.mxu0 0.0
    %774 = vmatpush1.msra.mxu0 0.0
    %775 = vmatprep.subr.mxu0 0.0
    %776 = vmatpush1.msra.mxu0 0.0
    %777 = vmatprep.subr.mxu0 0.0
    %778 = vmatpush1.msra.mxu0 0.0
    %779 = vmatprep.subr.mxu0 0.0
    %780 = vmatpush1.msra.mxu0 0.0
    %781 = vmatprep.subr.mxu0 0.0
    %782 = vmatpush1.msra.mxu0 0.0
    %783 = vmatprep.subr.mxu0 0.0
    %784 = vmatpush1.msra.mxu0 %v683
    %785 = vmatprep.subr.mxu0 0.0
    %786 = vmatpush1.msra.mxu0 %v682
    %787 = vmatprep.subr.mxu0 0.0
    %788 = vmatpush1.msra.mxu0 %v681
    %789 = vmatprep.subr.mxu0 0.0
    %790 = vmatpush1.msra.mxu0 %v680
    %791 = vmatprep.subr.mxu0 0.0
    %792 = vmatpush2.msra.mxu0 0.0
    %793 = vmatprep.subr.mxu0 0.0
    %794 = vmatpush2.msra.mxu0 0.0
    %795 = vmatprep.subr.mxu0 0.0
    %796 = vmatpush2.msra.mxu0 0.0
    %797 = vmatprep.subr.mxu0 0.0
    %798 = vmatpush2.msra.mxu0 0.0
    %799 = vmatprep.subr.mxu0 0.0
    %800 = vmatpush2.msra.mxu0 0.0
    %801 = vmatprep.subr.mxu0 0.0
    %802 = vmatpush2.msra.mxu0 0.0
    %803 = vmatprep.subr.mxu0 0.0
    %804 = vmatpush2.msra.mxu0 0.0
    %805 = vmatprep.subr.mxu0 0.0
    %806 = vmatpush2.msra.mxu0 0.0
    %807 = vmatprep.subr.mxu0 0.0
    %808 = vmatpush2.msra.mxu0 0.0
    %809 = vmatprep.subr.mxu0 0.0
    %810 = vmatpush2.msra.mxu0 0.0
    %811 = vmatprep.subr.mxu0 0.0
    %812 = vmatpush2.msra.mxu0 0.0
    %813 = vmatprep.subr.mxu0 0.0
    %814 = vmatpush2.msra.mxu0 0.0
    %815 = vmatprep.subr.mxu0 0.0
    %816 = vmatpush2.msra.mxu0 0.0
    %817 = vmatprep.subr.mxu0 0.0
    %818 = vmatpush2.msra.mxu0 0.0
    %819 = vmatprep.subr.mxu0 0.0
    %820 = vmatpush2.msra.mxu0 0.0
    %821 = vmatprep.subr.mxu0 0.0
    %822 = vmatpush2.msra.mxu0 0.0
    %823 = vmatprep.mubr.f32.mxu0 0.0
    %824 = vmatmul.mubr.f32.gmra.mxu0 %v522
    %v825 = vpop.f32.mrf.mxu0
    %v826 = vadd.f32 %v756, %v825
    %v827 = vpop.f32.mrf.mxu0
    %828 = vdwg.mxu0
    %s829 = scalar_lea.vmem [#allocation12], 16
    %v830 = vld [vmem:[%s829] sm:$0xff]
    %v831 = vld [vmem:[%s829 + $0x8] sm:$0xff]
    %832 = vmatprep.subr.mxu0 0.0
    %833 = vmatpush1.msra.mxu0 0.0
    %834 = vmatprep.subr.mxu0 0.0
    %835 = vmatpush1.msra.mxu0 0.0
    %836 = vmatprep.subr.mxu0 0.0
    %837 = vmatpush1.msra.mxu0 0.0
    %838 = vmatprep.subr.mxu0 0.0
    %839 = vmatpush1.msra.mxu0 0.0
    %840 = vmatprep.subr.mxu0 0.0
    %841 = vmatpush1.msra.mxu0 0.0
    %842 = vmatprep.subr.mxu0 0.0
    %843 = vmatpush1.msra.mxu0 0.0
    %844 = vmatprep.subr.mxu0 0.0
    %845 = vmatpush1.msra.mxu0 0.0
    %846 = vmatprep.subr.mxu0 0.0
    %847 = vmatpush1.msra.mxu0 0.0
    %848 = vmatprep.subr.mxu0 0.0
    %849 = vmatpush1.msra.mxu0 0.0
    %850 = vmatprep.subr.mxu0 0.0
    %851 = vmatpush1.msra.mxu0 0.0
    %852 = vmatprep.subr.mxu0 0.0
    %853 = vmatpush1.msra.mxu0 0.0
    %854 = vmatprep.subr.mxu0 0.0
    %855 = vmatpush1.msra.mxu0 0.0
    %856 = vmatprep.subr.mxu0 0.0
    %857 = vmatpush1.msra.mxu0 0.0
    %858 = vmatprep.subr.mxu0 0.0
    %859 = vmatpush1.msra.mxu0 0.0
    %860 = vmatprep.subr.mxu0 0.0
    %861 = vmatpush1.msra.mxu0 %v831
    %862 = vmatprep.subr.mxu0 0.0
    %863 = vmatpush1.msra.mxu0 %v830
    %864 = vmatprep.subr.mxu0 0.0
    %865 = vmatpush2.msra.mxu0 0.0
    %866 = vmatprep.subr.mxu0 0.0
    %867 = vmatpush2.msra.mxu0 0.0
    %868 = vmatprep.subr.mxu0 0.0
    %869 = vmatpush2.msra.mxu0 0.0
    %870 = vmatprep.subr.mxu0 0.0
    %871 = vmatpush2.msra.mxu0 0.0
    %872 = vmatprep.subr.mxu0 0.0
    %873 = vmatpush2.msra.mxu0 0.0
    %874 = vmatprep.subr.mxu0 0.0
    %875 = vmatpush2.msra.mxu0 0.0
    %876 = vmatprep.subr.mxu0 0.0
    %877 = vmatpush2.msra.mxu0 0.0
    %878 = vmatprep.subr.mxu0 0.0
    %879 = vmatpush2.msra.mxu0 0.0
    %880 = vmatprep.subr.mxu0 0.0
    %881 = vmatpush2.msra.mxu0 0.0
    %882 = vmatprep.subr.mxu0 0.0
    %883 = vmatpush2.msra.mxu0 0.0
    %884 = vmatprep.subr.mxu0 0.0
    %885 = vmatpush2.msra.mxu0 0.0
    %886 = vmatprep.subr.mxu0 0.0
    %887 = vmatpush2.msra.mxu0 0.0
    %888 = vmatprep.subr.mxu0 0.0
    %889 = vmatpush2.msra.mxu0 0.0
    %890 = vmatprep.subr.mxu0 0.0
    %891 = vmatpush2.msra.mxu0 0.0
    %892 = vmatprep.subr.mxu0 0.0
    %893 = vmatpush2.msra.mxu0 0.0
    %894 = vmatprep.subr.mxu0 0.0
    %895 = vmatpush2.msra.mxu0 0.0
    %896 = vmatprep.mubr.f32.mxu0 0.0
    %897 = vmatmul.mubr.f32.gmra.mxu0 %v598
    %v898 = vpop.f32.mrf.mxu0
    %v899 = vadd.f32 0.0, %v898
    %v900 = vpop.f32.mrf.mxu0
    %901 = vdwg.mxu0
    %v902 = vadd.f32 %v826, %v899
    %s903 = scalar_lea.vmem %s12, 1
    %v904 = vld [vmem:[%s903] sm:$0x1]
    %v906 = vlaneseq
    %v907 = vshrl.u32 %v906, 7
    %v908 = vsub.s32 0, %v907
    %v909 = vrot.slane %v904, %v908
    %v911 = vadd.f32 %v902, %v909
    %v912 = vmax.f32 %v678, %v911
    %vm913 = vcmask 254976
    %914 = vst.msk [vmem:[#allocation14] sm:$0x3] %vm913, %v912
    // Predicated region
    $region78: #{tpu_custom_call.1} parent=1 // pred_check
      _
    $region79: #{tpu_custom_call.1} parent=1 // pred_check_branch
      %916 = sbr.rel (0) target = $region81
    $region80: #{tpu_custom_call.1} parent=1 // pred_region
      %s918 = ssub.s32 32, 32
      %919 = vsyncadd [#allocation5], %s918
      %s921 = sshll.u32 [#allocation14], 4
      %s922 = int_to_ptr.vmem [resolvable:$true] %s921
      %924 = dma.vmem_to_hbm [thread:$0]  %s922, 32, %s13, [#allocation5]
    $region81: #{tpu_custom_call.1} parent=1 // pred_fallthru
      _
    // Predicated region
    $region82: #{tpu_custom_call.1} parent=1 // pred_check
      _
    $region83: #{tpu_custom_call.1} parent=1 // pred_check_branch
      %926 = sbr.rel (0) target = $region85
    $region84: #{tpu_custom_call.1} parent=1 // pred_region
      _
    $region85: #{tpu_custom_call.1} parent=1 // pred_fallthru
      _
    // Predicated region
    $region86: #{tpu_custom_call.1} parent=1 // pred_check
      _
    $region87: #{tpu_custom_call.1} parent=1 // pred_check_branch
      %928 = sbr.rel (0) target = $region89
    $region88: #{tpu_custom_call.1} parent=1 // pred_region
      %929 = dma.done [#allocation5], 32
    $region89: #{tpu_custom_call.1} parent=1 // pred_fallthru
      _
    // Predicated region
    $region90: #{tpu_custom_call.1} parent=1 // pred_check
      _
    $region91: #{tpu_custom_call.1} parent=1 // pred_check_branch
      %931 = sbr.rel (0) target = $region93
    $region92: #{tpu_custom_call.1} parent=1 // pred_region
      _
    $region93: #{tpu_custom_call.1} parent=1 // pred_fallthru
      _
    %932 = vsyncpa [#allocation4], 1
    %933 = vsyncpa [#allocation7], 1
    %934 = vsyncpa [#allocation10], 1
    %935 = vsyncpa [#allocation13], 1
    %936 = vsyncpa [#allocation5], 1

</llo_original>
